<compile_context>
chip_gen: v5e
topology: v5e:2x2
jax: 0.10.0
libtpu: 0.0.40
codegen_flags: <defaults>
</compile_context>

<pallas_src>
import jax
import jax.numpy as jnp
from jax.experimental import pallas as pl
from jax.experimental.pallas import tpu as pltpu


def _round_up(a, b):
    return -(-a // b) * b


def _pick_tile(n, h, block_budget_bytes=16 * 1024 * 1024):
    """Pick an edge-dim tile t (multiple of 8) and the padded edge size n_pad.

    Sizes the double-buffered (t, t, h) f32 streams (e in + e_new out, 4
    buffers total) to fit in `block_budget_bytes`, which keeps the pipeline
    comfortably inside VMEM on every generation (v7x has only 64 MiB / TC).
    """
    n8 = _round_up(max(n, 1), 8)
    cap = int((block_budget_bytes / (16.0 * h)) ** 0.5)
    cap = min(512, max(8, (cap // 8) * 8))
    if n8 <= cap:
        return n8, n8
    k = -(-n8 // cap)                   # tiles per edge dim
    t = _round_up(-(-n8 // k), 8)       # near-even tile, multiple of 8, <= cap
    return t, k * t


def _edge_feat_kernel(e_ref, xi_ref, xj_ref, uwt_ref, ub_ref, vwt_ref, vb_ref, o_ref):
    ti, tj, h = e_ref.shape
    # U(e): edge-wise linear over the hidden dim on the MXU, bias fused.
    e_flat = e_ref[...].reshape(ti * tj, h)
    ue = jnp.dot(e_flat, uwt_ref[...], preferred_element_type=jnp.float32)
    ue = (ue + ub_ref[...]).reshape(ti, tj, h)
    # V(x) for the row / column node blocks: tiny matmuls recomputed per tile
    # (<< the edge matmul; cheaper than an extra HBM round trip for Vx).
    vxi = jnp.dot(xi_ref[...], vwt_ref[...], preferred_element_type=jnp.float32) + vb_ref[...]
    vxj = jnp.dot(xj_ref[...], vwt_ref[...], preferred_element_type=jnp.float32) + vb_ref[...]
    gate = vxi[:, None, :] + vxj[None, :, :]
    o_ref[...] = (ue * gate).astype(o_ref.dtype)


def edge_feat(x, e, u_weight, u_bias, v_weight, v_bias,
              *, block_budget_bytes=16 * 1024 * 1024):
    """x: (N, H), e: (N, N, H); weights in PyTorch nn.Linear layout (out, in)."""
    n, h = x.shape
    assert e.shape == (n, n, h)

    t, n_pad = _pick_tile(n, h, block_budget_bytes)
    if n_pad != n:
        e = jnp.pad(e, ((0, n_pad - n), (0, n_pad - n), (0, 0)))
        x = jnp.pad(x, ((0, n_pad - n), (0, 0)))
    nt = n_pad // t

    uwt = u_weight.T            # (h, h) so the in-kernel dot is e @ W^T (nn.Linear)
    vwt = v_weight.T
    ub = u_bias.reshape(1, h)
    vb = v_bias.reshape(1, h)

    out = pl.pallas_call(
        _edge_feat_kernel,
        out_shape=jax.ShapeDtypeStruct((n_pad, n_pad, h), e.dtype),
        grid_spec=pltpu.PrefetchScalarGridSpec(
            num_scalar_prefetch=0,
            grid=(nt, nt),
            in_specs=[
                pl.BlockSpec((t, t, h), lambda i, j: (i, j, 0)),   # e tile
                pl.BlockSpec((t, h), lambda i, j: (i, 0)),         # x rows (i)
                pl.BlockSpec((t, h), lambda i, j: (j, 0)),         # x rows (j)
                pl.BlockSpec((h, h), lambda i, j: (0, 0)),         # U^T
                pl.BlockSpec((1, h), lambda i, j: (0, 0)),         # U bias
                pl.BlockSpec((h, h), lambda i, j: (0, 0)),         # V^T
                pl.BlockSpec((1, h), lambda i, j: (0, 0)),         # V bias
            ],
            out_specs=pl.BlockSpec((t, t, h), lambda i, j: (i, j, 0)),
        ),
        compiler_params=pltpu.CompilerParams(
            dimension_semantics=("parallel", "parallel"),
            vmem_limit_bytes=48 * 1024 * 1024,
        ),
    )(e, x, x, uwt, ub, vwt, vb)

    if n_pad != n:
        out = out[:n, :n, :]
    return out


def _reference(x, e, u_weight, u_bias, v_weight, v_bias):
    ue = jnp.einsum("ijh,oh->ijo", e, u_weight) + u_bias
    vx = x @ v_weight.T + v_bias
    return ue * (vx[:, None, :] + vx[None, :, :])


if __name__ == "__main__":
    key = jax.random.PRNGKey(0)
    k1, k2, k3, k4, k5, k6 = jax.random.split(key, 6)

    N, H = 16, 32  # N nodes, hidden_dim = H; e is (N, N, H), x is (N, H)
    x = jax.random.normal(k1, (N, H), dtype=jnp.float32)
    e = jax.random.normal(k2, (N, N, H), dtype=jnp.float32)
    bound = 1.0 / (H ** 0.5)  # PyTorch nn.Linear default init range
    u_w = jax.random.uniform(k3, (H, H), jnp.float32, -bound, bound)
    u_b = jax.random.uniform(k4, (H,), jnp.float32, -bound, bound)
    v_w = jax.random.uniform(k5, (H, H), jnp.float32, -bound, bound)
    v_b = jax.random.uniform(k6, (H,), jnp.float32, -bound, bound)

    out = edge_feat(x, e, u_w, u_b, v_w, v_b)
    out = jax.block_until_ready(out)

    expected = _reference(x, e, u_w, u_b, v_w, v_b)
    assert out.shape == (N, N, H)
    assert jnp.allclose(out, expected, atol=1e-4, rtol=1e-4), "mismatch vs reference"
    print("KERNEL_OK")
</pallas_src>

<mosaic_0001>
module attributes {stable_mosaic.version = 11 : i64} {
  func.func @_edge_feat_kernel(%arg0: i32, %arg1: i32, %arg2: memref<16x16x32xf32, #tpu.memory_space<vmem>>, %arg3: memref<16x32xf32, #tpu.memory_space<vmem>>, %arg4: memref<16x32xf32, #tpu.memory_space<vmem>>, %arg5: memref<32x32xf32, #tpu.memory_space<vmem>>, %arg6: memref<1x32xf32, #tpu.memory_space<vmem>>, %arg7: memref<32x32xf32, #tpu.memory_space<vmem>>, %arg8: memref<1x32xf32, #tpu.memory_space<vmem>>, %arg9: memref<16x16x32xf32, #tpu.memory_space<vmem>>) attributes {dimension_semantics = [#tpu.dimension_semantics<parallel>, #tpu.dimension_semantics<parallel>], iteration_bounds = array<i64: 1, 1>, scalar_prefetch = 0 : i64, scratch_operands = 0 : i64, tpu.core_type = #tpu.core_type<tc>, window_params = [{transform_indices = @transform_0, window_bounds = array<i64: 16, 16, 32>}, {transform_indices = @transform_1, window_bounds = array<i64: 16, 32>}, {transform_indices = @transform_2, window_bounds = array<i64: 16, 32>}, {pipeline_mode = #tpu.pipeline_mode<synchronous>, transform_indices = @transform_3, window_bounds = array<i64: 32, 32>}, {pipeline_mode = #tpu.pipeline_mode<synchronous>, transform_indices = @transform_4, window_bounds = array<i64: 1, 32>}, {pipeline_mode = #tpu.pipeline_mode<synchronous>, transform_indices = @transform_5, window_bounds = array<i64: 32, 32>}, {pipeline_mode = #tpu.pipeline_mode<synchronous>, transform_indices = @transform_6, window_bounds = array<i64: 1, 32>}, {transform_indices = @transform_7, window_bounds = array<i64: 16, 16, 32>}]} {
    %c0 = arith.constant 0 : index
    %c0_0 = arith.constant 0 : index
    %c0_1 = arith.constant 0 : index
    %0 = vector.load %arg2[%c0, %c0_0, %c0_1] : memref<16x16x32xf32, #tpu.memory_space<vmem>>, vector<16x16x32xf32>
    %1 = vector.shape_cast %0 : vector<16x16x32xf32> to vector<256x32xf32>
    %c0_2 = arith.constant 0 : index
    %c0_3 = arith.constant 0 : index
    %2 = vector.load %arg5[%c0_2, %c0_3] : memref<32x32xf32, #tpu.memory_space<vmem>>, vector<32x32xf32>
    %cst = arith.constant dense<0.000000e+00> : vector<256x32xf32>
    %3 = tpu.matmul %1, %2, %cst {dimension_numbers = #tpu.dot_dimension_numbers<[1], [0], [0], [1], [0, 0, 1, 1], [], []>} : vector<256x32xf32>, vector<32x32xf32>, vector<256x32xf32> -> vector<256x32xf32>
    %c0_4 = arith.constant 0 : index
    %c0_5 = arith.constant 0 : index
    %4 = vector.load %arg6[%c0_4, %c0_5] : memref<1x32xf32, #tpu.memory_space<vmem>>, vector<1x32xf32>
    %5 = vector.broadcast %4 : vector<1x32xf32> to vector<256x32xf32>
    %6 = arith.addf %3, %5 : vector<256x32xf32>
    %7 = vector.shape_cast %6 : vector<256x32xf32> to vector<16x16x32xf32>
    %c0_6 = arith.constant 0 : index
    %c0_7 = arith.constant 0 : index
    %8 = vector.load %arg3[%c0_6, %c0_7] : memref<16x32xf32, #tpu.memory_space<vmem>>, vector<16x32xf32>
    %c0_8 = arith.constant 0 : index
    %c0_9 = arith.constant 0 : index
    %9 = vector.load %arg7[%c0_8, %c0_9] : memref<32x32xf32, #tpu.memory_space<vmem>>, vector<32x32xf32>
    %cst_10 = arith.constant dense<0.000000e+00> : vector<16x32xf32>
    %10 = tpu.matmul %8, %9, %cst_10 {dimension_numbers = #tpu.dot_dimension_numbers<[1], [0], [0], [1], [0, 0, 1, 1], [], []>} : vector<16x32xf32>, vector<32x32xf32>, vector<16x32xf32> -> vector<16x32xf32>
    %c0_11 = arith.constant 0 : index
    %c0_12 = arith.constant 0 : index
    %11 = vector.load %arg8[%c0_11, %c0_12] : memref<1x32xf32, #tpu.memory_space<vmem>>, vector<1x32xf32>
    %12 = vector.broadcast %11 : vector<1x32xf32> to vector<16x32xf32>
    %13 = arith.addf %10, %12 : vector<16x32xf32>
    %c0_13 = arith.constant 0 : index
    %c0_14 = arith.constant 0 : index
    %14 = vector.load %arg4[%c0_13, %c0_14] : memref<16x32xf32, #tpu.memory_space<vmem>>, vector<16x32xf32>
    %c0_15 = arith.constant 0 : index
    %c0_16 = arith.constant 0 : index
    %15 = vector.load %arg7[%c0_15, %c0_16] : memref<32x32xf32, #tpu.memory_space<vmem>>, vector<32x32xf32>
    %cst_17 = arith.constant dense<0.000000e+00> : vector<16x32xf32>
    %16 = tpu.matmul %14, %15, %cst_17 {dimension_numbers = #tpu.dot_dimension_numbers<[1], [0], [0], [1], [0, 0, 1, 1], [], []>} : vector<16x32xf32>, vector<32x32xf32>, vector<16x32xf32> -> vector<16x32xf32>
    %c0_18 = arith.constant 0 : index
    %c0_19 = arith.constant 0 : index
    %17 = vector.load %arg8[%c0_18, %c0_19] : memref<1x32xf32, #tpu.memory_space<vmem>>, vector<1x32xf32>
    %18 = vector.broadcast %17 : vector<1x32xf32> to vector<16x32xf32>
    %19 = arith.addf %16, %18 : vector<16x32xf32>
    %20 = vector.shape_cast %13 : vector<16x32xf32> to vector<16x1x32xf32>
    %21 = vector.shape_cast %19 : vector<16x32xf32> to vector<1x16x32xf32>
    %22 = vector.broadcast %20 : vector<16x1x32xf32> to vector<16x16x32xf32>
    %23 = vector.broadcast %21 : vector<1x16x32xf32> to vector<16x16x32xf32>
    %24 = arith.addf %22, %23 : vector<16x16x32xf32>
    %25 = arith.mulf %7, %24 : vector<16x16x32xf32>
    %c0_20 = arith.constant 0 : index
    %c0_21 = arith.constant 0 : index
    %c0_22 = arith.constant 0 : index
    %26 = vector.load %arg9[%c0_20, %c0_21, %c0_22] : memref<16x16x32xf32, #tpu.memory_space<vmem>>, vector<16x16x32xf32>
    tpu.vector_store %arg9[%c0_20, %c0_21, %c0_22], %25 {strides = array<i32>} : memref<16x16x32xf32, #tpu.memory_space<vmem>>, vector<16x16x32xf32>,
    return
  }
  func.func @transform_0(%arg0: i32, %arg1: i32) -> (i32, i32, i32) {
    %c0_i32 = arith.constant 0 : i32
    %c0_i32_0 = arith.constant 0 : i32
    return %arg0, %arg1, %c0_i32 : i32, i32, i32
  }
  func.func @transform_1(%arg0: i32, %arg1: i32) -> (i32, i32) {
    %c0_i32 = arith.constant 0 : i32
    %c0_i32_0 = arith.constant 0 : i32
    return %arg0, %c0_i32 : i32, i32
  }
  func.func @transform_2(%arg0: i32, %arg1: i32) -> (i32, i32) {
    %c0_i32 = arith.constant 0 : i32
    %c0_i32_0 = arith.constant 0 : i32
    return %arg1, %c0_i32 : i32, i32
  }
  func.func @transform_3(%arg0: i32, %arg1: i32) -> (i32, i32) {
    %c0_i32 = arith.constant 0 : i32
    %c0_i32_0 = arith.constant 0 : i32
    %c0_i32_1 = arith.constant 0 : i32
    return %c0_i32, %c0_i32_0 : i32, i32
  }
  func.func @transform_4(%arg0: i32, %arg1: i32) -> (i32, i32) {
    %c0_i32 = arith.constant 0 : i32
    %c0_i32_0 = arith.constant 0 : i32
    %c0_i32_1 = arith.constant 0 : i32
    return %c0_i32, %c0_i32_0 : i32, i32
  }
  func.func @transform_5(%arg0: i32, %arg1: i32) -> (i32, i32) {
    %c0_i32 = arith.constant 0 : i32
    %c0_i32_0 = arith.constant 0 : i32
    %c0_i32_1 = arith.constant 0 : i32
    return %c0_i32, %c0_i32_0 : i32, i32
  }
  func.func @transform_6(%arg0: i32, %arg1: i32) -> (i32, i32) {
    %c0_i32 = arith.constant 0 : i32
    %c0_i32_0 = arith.constant 0 : i32
    %c0_i32_1 = arith.constant 0 : i32
    return %c0_i32, %c0_i32_0 : i32, i32
  }
  func.func @transform_7(%arg0: i32, %arg1: i32) -> (i32, i32, i32) {
    %c0_i32 = arith.constant 0 : i32
    %c0_i32_0 = arith.constant 0 : i32
    return %arg0, %arg1, %c0_i32 : i32, i32, i32
  }
}

</mosaic_0001>

<llo_original>
// kernel: tpu_custom_call.1
$region0: #{tpu_custom_call.1}
  #allocation0 [shape = 'u32[]', space=smem, size = 0x4, offset = 0x4, fixed_abs, tag = 'smem constant byte address 0x4 - core index']
  #allocation1 [shape = 'u32[72,128]{1,0:T(1,128)}', space=vmem, size = 0x9000, scoped, tag = 'internal scratch']
  %s0 = inlined_call_operand.hbm [shape: f32[16,16,32], index: 0, kind: input, shape index: {}]
  %s1 = inlined_call_operand.hbm [shape: f32[16,32], index: 1, kind: input, shape index: {}]
  %s2 = inlined_call_operand.hbm [shape: f32[16,32], index: 2, kind: input, shape index: {}]
  %s3 = inlined_call_operand.hbm [shape: f32[32,32], index: 3, kind: input, shape index: {}]
  %s4 = inlined_call_operand.vmem [shape: f32[1,32], index: 4, kind: input, shape index: {}]
  %s5 = inlined_call_operand.hbm [shape: f32[32,32], index: 5, kind: input, shape index: {}]
  %s6 = inlined_call_operand.vmem [shape: f32[1,32], index: 6, kind: input, shape index: {}]
  %s7 = inlined_call_operand.hbm [shape: f32[16,16,32], index: 7, kind: output, shape index: {}]
  %s8 = sld [smem:[#allocation0]]
  $region58: #{tpu_custom_call.1} parent=0
    _
  %s10 = ssub.s32 1, %s8
  %s11 = scalar_select 0, %s10, %s8
  $region1: #{tpu_custom_call.1} parent=0
    #allocation2 [shape = 'u8[131072]{0}', space=vmem, size = 0x20000, scoped, tag = 'input window, operand 0, single buffered']
    #allocation3 [shape = 's32[1]{0}', space=sflag, size = 0x4, scoped, tag = 'scoped memory for tpu_custom_call.1']
    #allocation4 [shape = 's32[1]{0}', space=sflag, size = 0x4, scoped, tag = 'scoped memory for tpu_custom_call.1']
    #allocation5 [shape = 'u8[8192]{0}', space=vmem, size = 0x2000, scoped, tag = 'input window, operand 1, single buffered']
    #allocation6 [shape = 's32[1]{0}', space=sflag, size = 0x4, scoped, tag = 'scoped memory for tpu_custom_call.1']
    #allocation7 [shape = 'u8[8192]{0}', space=vmem, size = 0x2000, scoped, tag = 'input window, operand 2, single buffered']
    #allocation8 [shape = 'u8[16384]{0}', space=vmem, size = 0x4000, scoped, tag = 'input window, operand 3, single buffered']
    #allocation9 [shape = 's32[1]{0}', space=sflag, size = 0x4, scoped, tag = 'scoped memory for tpu_custom_call.1']
    #allocation10 [shape = 'u8[16384]{0}', space=vmem, size = 0x4000, scoped, tag = 'input window, operand 5, single buffered']
    #allocation11 [shape = 'u8[131072]{0}', space=vmem, size = 0x20000, scoped, tag = 'output window, operand 0, single buffered']
    %12 = vsyncpa [#allocation3], 0
    %13 = vsyncpa [#allocation6], 0
    %14 = vsyncpa [#allocation9], 0
    %15 = vsyncpa [#allocation4], 0
    // Predicated region
    $region2: #{tpu_custom_call.1} parent=1 // pred_check
      _
    $region3: #{tpu_custom_call.1} parent=1 // pred_check_branch
      %17 = sbr.rel (0) target = $region5
    $region4: #{tpu_custom_call.1} parent=1 // pred_region
      %19 = vsyncadd [#allocation3], 0
      %s20 = sshll.u32 %s0, 4
      %s21 = int_to_ptr.hbm [resolvable:$true] %s20
      %s22 = sshll.u32 [#allocation2], 4
      %s23 = int_to_ptr.vmem [resolvable:$true] %s22
      %28 = dma.hbm_to_vmem [thread:$0]  %s21, 4096, %s23, [#allocation3], 128, 128, 8
    $region5: #{tpu_custom_call.1} parent=1 // pred_fallthru
      _
    // Predicated region
    $region6: #{tpu_custom_call.1} parent=1 // pred_check
      _
    $region7: #{tpu_custom_call.1} parent=1 // pred_check_branch
      %30 = sbr.rel (0) target = $region9
    $region8: #{tpu_custom_call.1} parent=1 // pred_region
      %32 = vsyncadd [#allocation6], 0
      %s33 = sshll.u32 %s1, 4
      %s34 = int_to_ptr.hbm [resolvable:$true] %s33
      %s35 = sshll.u32 [#allocation5], 4
      %s36 = int_to_ptr.vmem [resolvable:$true] %s35
      %41 = dma.hbm_to_vmem [thread:$0]  %s34, 256, %s36, [#allocation6], 128, 128, 8
    $region9: #{tpu_custom_call.1} parent=1 // pred_fallthru
      _
    // Predicated region
    $region10: #{tpu_custom_call.1} parent=1 // pred_check
      _
    $region11: #{tpu_custom_call.1} parent=1 // pred_check_branch
      %43 = sbr.rel (0) target = $region13
    $region12: #{tpu_custom_call.1} parent=1 // pred_region
      %45 = vsyncadd [#allocation6], 0
      %s46 = sshll.u32 %s2, 4
      %s47 = int_to_ptr.hbm [resolvable:$true] %s46
      %s48 = sshll.u32 [#allocation7], 4
      %s49 = int_to_ptr.vmem [resolvable:$true] %s48
      %54 = dma.hbm_to_vmem [thread:$0]  %s47, 256, %s49, [#allocation6], 128, 128, 8
    $region13: #{tpu_custom_call.1} parent=1 // pred_fallthru
      _
    // Predicated region
    $region14: #{tpu_custom_call.1} parent=1 // pred_check
      _
    $region15: #{tpu_custom_call.1} parent=1 // pred_check_branch
      %56 = sbr.rel (0) target = $region17
    $region16: #{tpu_custom_call.1} parent=1 // pred_region
      %58 = vsyncadd [#allocation9], 0
      %s59 = sshll.u32 %s3, 4
      %s60 = int_to_ptr.hbm [resolvable:$true] %s59
      %s61 = sshll.u32 [#allocation8], 4
      %s62 = int_to_ptr.vmem [resolvable:$true] %s61
      %67 = dma.hbm_to_vmem [thread:$0]  %s60, 512, %s62, [#allocation9], 128, 128, 8
    $region17: #{tpu_custom_call.1} parent=1 // pred_fallthru
      _
    // Predicated region
    $region18: #{tpu_custom_call.1} parent=1 // pred_check
      _
    $region19: #{tpu_custom_call.1} parent=1 // pred_check_branch
      %69 = sbr.rel (0) target = $region21
    $region20: #{tpu_custom_call.1} parent=1 // pred_region
      _
    $region21: #{tpu_custom_call.1} parent=1 // pred_fallthru
      _
    // Predicated region
    $region22: #{tpu_custom_call.1} parent=1 // pred_check
      _
    $region23: #{tpu_custom_call.1} parent=1 // pred_check_branch
      %71 = sbr.rel (0) target = $region25
    $region24: #{tpu_custom_call.1} parent=1 // pred_region
      %73 = vsyncadd [#allocation9], 0
      %s74 = sshll.u32 %s5, 4
      %s75 = int_to_ptr.hbm [resolvable:$true] %s74
      %s76 = sshll.u32 [#allocation10], 4
      %s77 = int_to_ptr.vmem [resolvable:$true] %s76
      %82 = dma.hbm_to_vmem [thread:$0]  %s75, 512, %s77, [#allocation9], 128, 128, 8
    $region25: #{tpu_custom_call.1} parent=1 // pred_fallthru
      _
    // Predicated region
    $region26: #{tpu_custom_call.1} parent=1 // pred_check
      _
    $region27: #{tpu_custom_call.1} parent=1 // pred_check_branch
      %84 = sbr.rel (0) target = $region29
    $region28: #{tpu_custom_call.1} parent=1 // pred_region
      _
    $region29: #{tpu_custom_call.1} parent=1 // pred_fallthru
      _
    // Predicated region
    $region30: #{tpu_custom_call.1} parent=1 // pred_check
      _
    $region31: #{tpu_custom_call.1} parent=1 // pred_check_branch
      %86 = sbr.rel (0) target = $region33
    $region32: #{tpu_custom_call.1} parent=1 // pred_region
      %88 = dma.done [#allocation3], 4096
    $region33: #{tpu_custom_call.1} parent=1 // pred_fallthru
      _
    // Predicated region
    $region34: #{tpu_custom_call.1} parent=1 // pred_check
      _
    $region35: #{tpu_custom_call.1} parent=1 // pred_check_branch
      %90 = sbr.rel (0) target = $region37
    $region36: #{tpu_custom_call.1} parent=1 // pred_region
      %92 = dma.done [#allocation6], 256
    $region37: #{tpu_custom_call.1} parent=1 // pred_fallthru
      _
    // Predicated region
    $region38: #{tpu_custom_call.1} parent=1 // pred_check
      _
    $region39: #{tpu_custom_call.1} parent=1 // pred_check_branch
      %94 = sbr.rel (0) target = $region41
    $region40: #{tpu_custom_call.1} parent=1 // pred_region
      %96 = dma.done [#allocation6], 256
    $region41: #{tpu_custom_call.1} parent=1 // pred_fallthru
      _
    // Predicated region
    $region42: #{tpu_custom_call.1} parent=1 // pred_check
      _
    $region43: #{tpu_custom_call.1} parent=1 // pred_check_branch
      %98 = sbr.rel (0) target = $region45
    $region44: #{tpu_custom_call.1} parent=1 // pred_region
      %100 = dma.done [#allocation9], 512
    $region45: #{tpu_custom_call.1} parent=1 // pred_fallthru
      _
    // Predicated region
    $region46: #{tpu_custom_call.1} parent=1 // pred_check
      _
    $region47: #{tpu_custom_call.1} parent=1 // pred_check_branch
      %102 = sbr.rel (0) target = $region49
    $region48: #{tpu_custom_call.1} parent=1 // pred_region
      %104 = dma.done [#allocation9], 512
    $region49: #{tpu_custom_call.1} parent=1 // pred_fallthru
      _
    %v105 = vld [vmem:[#allocation2] sm:$0xff]
    %v106 = vld [vmem:[#allocation2 + $0x8] sm:$0xff]
    %v107 = vld [vmem:[#allocation2 + $0x10] sm:$0xff]
    %v108 = vld [vmem:[#allocation2 + $0x18] sm:$0xff]
    %v109 = vld [vmem:[#allocation2 + $0x20] sm:$0xff]
    %v110 = vld [vmem:[#allocation2 + $0x28] sm:$0xff]
    %v111 = vld [vmem:[#allocation2 + $0x30] sm:$0xff]
    %v112 = vld [vmem:[#allocation2 + $0x38] sm:$0xff]
    %v113 = vld [vmem:[#allocation2 + $0x40] sm:$0xff]
    %v114 = vld [vmem:[#allocation2 + $0x48] sm:$0xff]
    %v115 = vld [vmem:[#allocation2 + $0x50] sm:$0xff]
    %v116 = vld [vmem:[#allocation2 + $0x58] sm:$0xff]
    %v117 = vld [vmem:[#allocation2 + $0x60] sm:$0xff]
    %v118 = vld [vmem:[#allocation2 + $0x68] sm:$0xff]
    %v119 = vld [vmem:[#allocation2 + $0x70] sm:$0xff]
    %v120 = vld [vmem:[#allocation2 + $0x78] sm:$0xff]
    %v121 = vld [vmem:[#allocation2 + $0x80] sm:$0xff]
    %v122 = vld [vmem:[#allocation2 + $0x88] sm:$0xff]
    %v123 = vld [vmem:[#allocation2 + $0x90] sm:$0xff]
    %v124 = vld [vmem:[#allocation2 + $0x98] sm:$0xff]
    %v125 = vld [vmem:[#allocation2 + $0xa0] sm:$0xff]
    %v126 = vld [vmem:[#allocation2 + $0xa8] sm:$0xff]
    %v127 = vld [vmem:[#allocation2 + $0xb0] sm:$0xff]
    %v128 = vld [vmem:[#allocation2 + $0xb8] sm:$0xff]
    %v129 = vld [vmem:[#allocation2 + $0xc0] sm:$0xff]
    %v130 = vld [vmem:[#allocation2 + $0xc8] sm:$0xff]
    %v131 = vld [vmem:[#allocation2 + $0xd0] sm:$0xff]
    %v132 = vld [vmem:[#allocation2 + $0xd8] sm:$0xff]
    %v133 = vld [vmem:[#allocation2 + $0xe0] sm:$0xff]
    %v134 = vld [vmem:[#allocation2 + $0xe8] sm:$0xff]
    %v135 = vld [vmem:[#allocation2 + $0xf0] sm:$0xff]
    %v136 = vld [vmem:[#allocation2 + $0xf8] sm:$0xff]
    %v137 = vld [vmem:[#allocation8] sm:$0xff]
    %v138 = vld [vmem:[#allocation8 + $0x8] sm:$0xff]
    %v139 = vld [vmem:[#allocation8 + $0x10] sm:$0xff]
    %v140 = vld [vmem:[#allocation8 + $0x18] sm:$0xff]
    %v141 = vld [vmem:[%s4] sm:$0x1]
    %v143 = vperm.slane %v141, 0
    %vm145 = vcmask 261120
    %v147 = vsel %vm145, %v105, 0
    %v150 = vsel %vm145, %v106, 0
    %v153 = vsel %vm145, %v107, 0
    %v156 = vsel %vm145, %v108, 0
    %v159 = vsel %vm145, %v109, 0
    %v162 = vsel %vm145, %v110, 0
    %v165 = vsel %vm145, %v111, 0
    %v168 = vsel %vm145, %v112, 0
    %v171 = vsel %vm145, %v113, 0
    %v174 = vsel %vm145, %v114, 0
    %v177 = vsel %vm145, %v115, 0
    %v180 = vsel %vm145, %v116, 0
    %v183 = vsel %vm145, %v117, 0
    %v186 = vsel %vm145, %v118, 0
    %v189 = vsel %vm145, %v119, 0
    %v192 = vsel %vm145, %v120, 0
    %v195 = vsel %vm145, %v121, 0
    %v198 = vsel %vm145, %v122, 0
    %v201 = vsel %vm145, %v123, 0
    %v204 = vsel %vm145, %v124, 0
    %v207 = vsel %vm145, %v125, 0
    %v210 = vsel %vm145, %v126, 0
    %v213 = vsel %vm145, %v127, 0
    %v216 = vsel %vm145, %v128, 0
    %v219 = vsel %vm145, %v129, 0
    %v222 = vsel %vm145, %v130, 0
    %v225 = vsel %vm145, %v131, 0
    %v228 = vsel %vm145, %v132, 0
    %v231 = vsel %vm145, %v133, 0
    %v234 = vsel %vm145, %v134, 0
    %v237 = vsel %vm145, %v135, 0
    %v240 = vsel %vm145, %v136, 0
    %242 = vmatpush.msra.mxu0 0.0
    %243 = vmatpush.msra.mxu0 0.0
    %244 = vmatpush.msra.mxu0 0.0
    %245 = vmatpush.msra.mxu0 0.0
    %246 = vmatpush.msra.mxu0 0.0
    %247 = vmatpush.msra.mxu0 0.0
    %248 = vmatpush.msra.mxu0 0.0
    %249 = vmatpush.msra.mxu0 0.0
    %250 = vmatpush.msra.mxu0 0.0
    %251 = vmatpush.msra.mxu0 0.0
    %252 = vmatpush.msra.mxu0 0.0
    %253 = vmatpush.msra.mxu0 0.0
    %254 = vmatpush.msra.mxu0 %v140
    %255 = vmatpush.msra.mxu0 %v139
    %256 = vmatpush.msra.mxu0 %v138
    %257 = vmatpush.msra.mxu0 %v137
    %258 = vmatmul.f32.gmra.mxu0 %v147
    %v259 = vpop.f32.mrf.mxu0
    %v260 = vadd.f32 %v143, %v259
    %261 = vmatmul.f32.gmra.mxu0 %v150
    %v262 = vpop.f32.mrf.mxu0
    %v263 = vadd.f32 %v143, %v262
    %264 = vmatmul.f32.gmra.mxu0 %v153
    %v265 = vpop.f32.mrf.mxu0
    %v266 = vadd.f32 %v143, %v265
    %267 = vmatmul.f32.gmra.mxu0 %v156
    %v268 = vpop.f32.mrf.mxu0
    %v269 = vadd.f32 %v143, %v268
    %270 = vmatmul.f32.gmra.mxu0 %v159
    %v271 = vpop.f32.mrf.mxu0
    %v272 = vadd.f32 %v143, %v271
    %273 = vmatmul.f32.gmra.mxu0 %v162
    %v274 = vpop.f32.mrf.mxu0
    %v275 = vadd.f32 %v143, %v274
    %276 = vmatmul.f32.gmra.mxu0 %v165
    %v277 = vpop.f32.mrf.mxu0
    %v278 = vadd.f32 %v143, %v277
    %279 = vmatmul.f32.gmra.mxu0 %v168
    %v280 = vpop.f32.mrf.mxu0
    %v281 = vadd.f32 %v143, %v280
    %282 = vmatmul.f32.gmra.mxu0 %v171
    %v283 = vpop.f32.mrf.mxu0
    %v284 = vadd.f32 %v143, %v283
    %285 = vmatmul.f32.gmra.mxu0 %v174
    %v286 = vpop.f32.mrf.mxu0
    %v287 = vadd.f32 %v143, %v286
    %288 = vmatmul.f32.gmra.mxu0 %v177
    %v289 = vpop.f32.mrf.mxu0
    %v290 = vadd.f32 %v143, %v289
    %291 = vmatmul.f32.gmra.mxu0 %v180
    %v292 = vpop.f32.mrf.mxu0
    %v293 = vadd.f32 %v143, %v292
    %294 = vmatmul.f32.gmra.mxu0 %v183
    %v295 = vpop.f32.mrf.mxu0
    %v296 = vadd.f32 %v143, %v295
    %297 = vmatmul.f32.gmra.mxu0 %v186
    %v298 = vpop.f32.mrf.mxu0
    %v299 = vadd.f32 %v143, %v298
    %300 = vmatmul.f32.gmra.mxu0 %v189
    %v301 = vpop.f32.mrf.mxu0
    %v302 = vadd.f32 %v143, %v301
    %303 = vmatmul.f32.gmra.mxu0 %v192
    %v304 = vpop.f32.mrf.mxu0
    %v305 = vadd.f32 %v143, %v304
    %306 = vmatmul.f32.gmra.mxu0 %v195
    %v307 = vpop.f32.mrf.mxu0
    %v308 = vadd.f32 %v143, %v307
    %309 = vmatmul.f32.gmra.mxu0 %v198
    %v310 = vpop.f32.mrf.mxu0
    %v311 = vadd.f32 %v143, %v310
    %312 = vmatmul.f32.gmra.mxu0 %v201
    %v313 = vpop.f32.mrf.mxu0
    %v314 = vadd.f32 %v143, %v313
    %315 = vmatmul.f32.gmra.mxu0 %v204
    %v316 = vpop.f32.mrf.mxu0
    %v317 = vadd.f32 %v143, %v316
    %318 = vmatmul.f32.gmra.mxu0 %v207
    %v319 = vpop.f32.mrf.mxu0
    %v320 = vadd.f32 %v143, %v319
    %321 = vmatmul.f32.gmra.mxu0 %v210
    %v322 = vpop.f32.mrf.mxu0
    %v323 = vadd.f32 %v143, %v322
    %324 = vmatmul.f32.gmra.mxu0 %v213
    %v325 = vpop.f32.mrf.mxu0
    %v326 = vadd.f32 %v143, %v325
    %327 = vmatmul.f32.gmra.mxu0 %v216
    %v328 = vpop.f32.mrf.mxu0
    %v329 = vadd.f32 %v143, %v328
    %330 = vmatmul.f32.gmra.mxu0 %v219
    %v331 = vpop.f32.mrf.mxu0
    %v332 = vadd.f32 %v143, %v331
    %333 = vmatmul.f32.gmra.mxu0 %v222
    %v334 = vpop.f32.mrf.mxu0
    %v335 = vadd.f32 %v143, %v334
    %336 = vmatmul.f32.gmra.mxu0 %v225
    %v337 = vpop.f32.mrf.mxu0
    %v338 = vadd.f32 %v143, %v337
    %339 = vmatmul.f32.gmra.mxu0 %v228
    %v340 = vpop.f32.mrf.mxu0
    %v341 = vadd.f32 %v143, %v340
    %342 = vmatmul.f32.gmra.mxu0 %v231
    %v343 = vpop.f32.mrf.mxu0
    %v344 = vadd.f32 %v143, %v343
    %345 = vmatmul.f32.gmra.mxu0 %v234
    %v346 = vpop.f32.mrf.mxu0
    %v347 = vadd.f32 %v143, %v346
    %348 = vmatmul.f32.gmra.mxu0 %v237
    %v349 = vpop.f32.mrf.mxu0
    %v350 = vadd.f32 %v143, %v349
    %351 = vmatmul.f32.gmra.mxu0 %v240
    %v352 = vpop.f32.mrf.mxu0
    %v353 = vadd.f32 %v143, %v352
    %354 = vdwg.mxu0
    %v355 = vld [vmem:[#allocation5] sm:$0xff]
    %v356 = vld [vmem:[#allocation5 + $0x8] sm:$0xff]
    %v357 = vld [vmem:[#allocation10] sm:$0xff]
    %v358 = vld [vmem:[#allocation10 + $0x8] sm:$0xff]
    %v359 = vld [vmem:[#allocation10 + $0x10] sm:$0xff]
    %v360 = vld [vmem:[#allocation10 + $0x18] sm:$0xff]
    %v361 = vld [vmem:[%s6] sm:$0x1]
    %v363 = vperm.slane %v361, 0
    %v366 = vsel %vm145, %v355, 0
    %v369 = vsel %vm145, %v356, 0
    %371 = vmatpush.msra.mxu0 0.0
    %372 = vmatpush.msra.mxu0 0.0
    %373 = vmatpush.msra.mxu0 0.0
    %374 = vmatpush.msra.mxu0 0.0
    %375 = vmatpush.msra.mxu0 0.0
    %376 = vmatpush.msra.mxu0 0.0
    %377 = vmatpush.msra.mxu0 0.0
    %378 = vmatpush.msra.mxu0 0.0
    %379 = vmatpush.msra.mxu0 0.0
    %380 = vmatpush.msra.mxu0 0.0
    %381 = vmatpush.msra.mxu0 0.0
    %382 = vmatpush.msra.mxu0 0.0
    %383 = vmatpush.msra.mxu0 %v360
    %384 = vmatpush.msra.mxu0 %v359
    %385 = vmatpush.msra.mxu0 %v358
    %386 = vmatpush.msra.mxu0 %v357
    %387 = vmatmul.f32.gmra.mxu0 %v366
    %v388 = vpop.f32.mrf.mxu0
    %v389 = vadd.f32 %v363, %v388
    %390 = vmatmul.f32.gmra.mxu0 %v369
    %v391 = vpop.f32.mrf.mxu0
    %v392 = vadd.f32 %v363, %v391
    %393 = vdwg.mxu0
    %v394 = vld [vmem:[#allocation7] sm:$0xff]
    %v395 = vld [vmem:[#allocation7 + $0x8] sm:$0xff]
    %v397 = vsel %vm145, %v394, 0
    %v400 = vsel %vm145, %v395, 0
    %402 = vmatpush.msra.mxu0 0.0
    %403 = vmatpush.msra.mxu0 0.0
    %404 = vmatpush.msra.mxu0 0.0
    %405 = vmatpush.msra.mxu0 0.0
    %406 = vmatpush.msra.mxu0 0.0
    %407 = vmatpush.msra.mxu0 0.0
    %408 = vmatpush.msra.mxu0 0.0
    %409 = vmatpush.msra.mxu0 0.0
    %410 = vmatpush.msra.mxu0 0.0
    %411 = vmatpush.msra.mxu0 0.0
    %412 = vmatpush.msra.mxu0 0.0
    %413 = vmatpush.msra.mxu0 0.0
    %414 = vmatpush.msra.mxu0 %v360
    %415 = vmatpush.msra.mxu0 %v359
    %416 = vmatpush.msra.mxu0 %v358
    %417 = vmatpush.msra.mxu0 %v357
    %418 = vmatmul.f32.gmra.mxu0 %v397
    %v419 = vpop.f32.mrf.mxu0
    %v420 = vadd.f32 %v363, %v419
    %421 = vmatmul.f32.gmra.mxu0 %v400
    %v422 = vpop.f32.mrf.mxu0
    %v423 = vadd.f32 %v363, %v422
    %424 = vdwg.mxu0
    %v427 = vrot.slane %v389, 1
    %v428 = vrot.slane %v389, 2
    %v429 = vrot.slane %v389, 3
    %v430 = vrot.slane %v389, 4
    %v431 = vrot.slane %v389, 5
    %v432 = vrot.slane %v389, 6
    %v433 = vrot.slane %v389, 7
    %v434 = vrot.slane %v392, 1
    %v435 = vrot.slane %v392, 2
    %v436 = vrot.slane %v392, 3
    %v437 = vrot.slane %v392, 4
    %v438 = vrot.slane %v392, 5
    %v439 = vrot.slane %v392, 6
    %v440 = vrot.slane %v392, 7
    %v441 = vperm.slane %v389, 0
    %v442 = vperm.slane %v427, 0
    %v443 = vperm.slane %v428, 0
    %v444 = vperm.slane %v429, 0
    %v445 = vperm.slane %v430, 0
    %v446 = vperm.slane %v431, 0
    %v447 = vperm.slane %v432, 0
    %v448 = vperm.slane %v433, 0
    %v449 = vperm.slane %v392, 0
    %v450 = vperm.slane %v434, 0
    %v451 = vperm.slane %v435, 0
    %v452 = vperm.slane %v436, 0
    %v453 = vperm.slane %v437, 0
    %v454 = vperm.slane %v438, 0
    %v455 = vperm.slane %v439, 0
    %v456 = vperm.slane %v440, 0
    %v473 = vadd.f32 %v441, %v420
    %v474 = vadd.f32 %v441, %v423
    %v475 = vadd.f32 %v442, %v420
    %v476 = vadd.f32 %v442, %v423
    %v477 = vadd.f32 %v443, %v420
    %v478 = vadd.f32 %v443, %v423
    %v479 = vadd.f32 %v444, %v420
    %v480 = vadd.f32 %v444, %v423
    %v481 = vadd.f32 %v445, %v420
    %v482 = vadd.f32 %v445, %v423
    %v483 = vadd.f32 %v446, %v420
    %v484 = vadd.f32 %v446, %v423
    %v485 = vadd.f32 %v447, %v420
    %v486 = vadd.f32 %v447, %v423
    %v487 = vadd.f32 %v448, %v420
    %v488 = vadd.f32 %v448, %v423
    %v489 = vadd.f32 %v449, %v420
    %v490 = vadd.f32 %v449, %v423
    %v491 = vadd.f32 %v450, %v420
    %v492 = vadd.f32 %v450, %v423
    %v493 = vadd.f32 %v451, %v420
    %v494 = vadd.f32 %v451, %v423
    %v495 = vadd.f32 %v452, %v420
    %v496 = vadd.f32 %v452, %v423
    %v497 = vadd.f32 %v453, %v420
    %v498 = vadd.f32 %v453, %v423
    %v499 = vadd.f32 %v454, %v420
    %v500 = vadd.f32 %v454, %v423
    %v501 = vadd.f32 %v455, %v420
    %v502 = vadd.f32 %v455, %v423
    %v503 = vadd.f32 %v456, %v420
    %v504 = vadd.f32 %v456, %v423
    %v505 = vmul.f32 %v260, %v473
    %v506 = vmul.f32 %v263, %v474
    %v507 = vmul.f32 %v266, %v475
    %v508 = vmul.f32 %v269, %v476
    %v509 = vmul.f32 %v272, %v477
    %v510 = vmul.f32 %v275, %v478
    %v511 = vmul.f32 %v278, %v479
    %v512 = vmul.f32 %v281, %v480
    %v513 = vmul.f32 %v284, %v481
    %v514 = vmul.f32 %v287, %v482
    %v515 = vmul.f32 %v290, %v483
    %v516 = vmul.f32 %v293, %v484
    %v517 = vmul.f32 %v296, %v485
    %v518 = vmul.f32 %v299, %v486
    %v519 = vmul.f32 %v302, %v487
    %v520 = vmul.f32 %v305, %v488
    %v521 = vmul.f32 %v308, %v489
    %v522 = vmul.f32 %v311, %v490
    %v523 = vmul.f32 %v314, %v491
    %v524 = vmul.f32 %v317, %v492
    %v525 = vmul.f32 %v320, %v493
    %v526 = vmul.f32 %v323, %v494
    %v527 = vmul.f32 %v326, %v495
    %v528 = vmul.f32 %v329, %v496
    %v529 = vmul.f32 %v332, %v497
    %v530 = vmul.f32 %v335, %v498
    %v531 = vmul.f32 %v338, %v499
    %v532 = vmul.f32 %v341, %v500
    %v533 = vmul.f32 %v344, %v501
    %v534 = vmul.f32 %v347, %v502
    %v535 = vmul.f32 %v350, %v503
    %v536 = vmul.f32 %v353, %v504
    %537 = vst.msk [vmem:[#allocation11] sm:$0xff] %vm145, %v505
    %538 = vst.msk [vmem:[#allocation11 + $0x8] sm:$0xff] %vm145, %v506
    %539 = vst.msk [vmem:[#allocation11 + $0x10] sm:$0xff] %vm145, %v507
    %540 = vst.msk [vmem:[#allocation11 + $0x18] sm:$0xff] %vm145, %v508
    %541 = vst.msk [vmem:[#allocation11 + $0x20] sm:$0xff] %vm145, %v509
    %542 = vst.msk [vmem:[#allocation11 + $0x28] sm:$0xff] %vm145, %v510
    %543 = vst.msk [vmem:[#allocation11 + $0x30] sm:$0xff] %vm145, %v511
    %544 = vst.msk [vmem:[#allocation11 + $0x38] sm:$0xff] %vm145, %v512
    %545 = vst.msk [vmem:[#allocation11 + $0x40] sm:$0xff] %vm145, %v513
    %546 = vst.msk [vmem:[#allocation11 + $0x48] sm:$0xff] %vm145, %v514
    %547 = vst.msk [vmem:[#allocation11 + $0x50] sm:$0xff] %vm145, %v515
    %548 = vst.msk [vmem:[#allocation11 + $0x58] sm:$0xff] %vm145, %v516
    %549 = vst.msk [vmem:[#allocation11 + $0x60] sm:$0xff] %vm145, %v517
    %550 = vst.msk [vmem:[#allocation11 + $0x68] sm:$0xff] %vm145, %v518
    %551 = vst.msk [vmem:[#allocation11 + $0x70] sm:$0xff] %vm145, %v519
    %552 = vst.msk [vmem:[#allocation11 + $0x78] sm:$0xff] %vm145, %v520
    %553 = vst.msk [vmem:[#allocation11 + $0x80] sm:$0xff] %vm145, %v521
    %554 = vst.msk [vmem:[#allocation11 + $0x88] sm:$0xff] %vm145, %v522
    %555 = vst.msk [vmem:[#allocation11 + $0x90] sm:$0xff] %vm145, %v523
    %556 = vst.msk [vmem:[#allocation11 + $0x98] sm:$0xff] %vm145, %v524
    %557 = vst.msk [vmem:[#allocation11 + $0xa0] sm:$0xff] %vm145, %v525
    %558 = vst.msk [vmem:[#allocation11 + $0xa8] sm:$0xff] %vm145, %v526
    %559 = vst.msk [vmem:[#allocation11 + $0xb0] sm:$0xff] %vm145, %v527
    %560 = vst.msk [vmem:[#allocation11 + $0xb8] sm:$0xff] %vm145, %v528
    %561 = vst.msk [vmem:[#allocation11 + $0xc0] sm:$0xff] %vm145, %v529
    %562 = vst.msk [vmem:[#allocation11 + $0xc8] sm:$0xff] %vm145, %v530
    %563 = vst.msk [vmem:[#allocation11 + $0xd0] sm:$0xff] %vm145, %v531
    %564 = vst.msk [vmem:[#allocation11 + $0xd8] sm:$0xff] %vm145, %v532
    %565 = vst.msk [vmem:[#allocation11 + $0xe0] sm:$0xff] %vm145, %v533
    %566 = vst.msk [vmem:[#allocation11 + $0xe8] sm:$0xff] %vm145, %v534
    %567 = vst.msk [vmem:[#allocation11 + $0xf0] sm:$0xff] %vm145, %v535
    %568 = vst.msk [vmem:[#allocation11 + $0xf8] sm:$0xff] %vm145, %v536
    // Predicated region
    $region50: #{tpu_custom_call.1} parent=1 // pred_check
      _
    $region51: #{tpu_custom_call.1} parent=1 // pred_check_branch
      %570 = sbr.rel (0) target = $region53
    $region52: #{tpu_custom_call.1} parent=1 // pred_region
      %572 = vsyncadd [#allocation4], 0
      %s573 = sshll.u32 [#allocation11], 4
      %s574 = int_to_ptr.vmem [resolvable:$true] %s573
      %s575 = sshll.u32 %s7, 4
      %s576 = int_to_ptr.hbm [resolvable:$true] %s575
      %581 = dma.vmem_to_hbm [thread:$0]  %s574, 4096, %s576, [#allocation4], 128, 128, 8
    $region53: #{tpu_custom_call.1} parent=1 // pred_fallthru
      _
    // Predicated region
    $region54: #{tpu_custom_call.1} parent=1 // pred_check
      _
    $region55: #{tpu_custom_call.1} parent=1 // pred_check_branch
      %583 = sbr.rel (0) target = $region57
    $region56: #{tpu_custom_call.1} parent=1 // pred_region
      %585 = dma.done [#allocation4], 4096
    $region57: #{tpu_custom_call.1} parent=1 // pred_fallthru
      _
    %586 = vsyncpa [#allocation3], 1
    %587 = vsyncpa [#allocation6], 1
    %588 = vsyncpa [#allocation9], 1
    %589 = vsyncpa [#allocation4], 1

</llo_original>
